<compile_context>
chip_gen: v5e
topology: v5e:2x2
jax: 0.10.0
libtpu: 0.0.40
codegen_flags: <defaults>
</compile_context>

<pallas_src>
import functools

import jax
import jax.numpy as jnp
from jax.experimental import pallas as pl
from jax.experimental.pallas import tpu as pltpu


_NUM_SPLITS = 2  # outer "parallel" grid axis -> shards rows across TCs on v7x


def _focal_loss_kernel(pred_ref, gold_ref, sum_ref, cnt_ref, *,
                       gamma, ignore_index):
    i = pl.program_id(1)

    # Output blocks are per-split accumulators: their index_map depends only on
    # the parallel axis, so they stay resident in VMEM across the "arbitrary"
    # row-block axis.  Pallas does not zero outputs -> init on the first step.
    @pl.when(i == 0)
    def _():
        sum_ref[...] = jnp.zeros_like(sum_ref)
        cnt_ref[...] = jnp.zeros_like(cnt_ref)

    x = pred_ref[...].astype(jnp.float32)             # (tn, C), cast in-register
    g = gold_ref[...]                                  # (tn, 1) int32

    # numerically stable log-sum-exp over the class (lane) dim
    m = jnp.max(x, axis=1, keepdims=True)
    lse = jnp.log(jnp.sum(jnp.exp(x - m), axis=1, keepdims=True)) + m

    # gather the gold-class logit via a one-hot select (NaN-safe: where, not *)
    col = jax.lax.broadcasted_iota(jnp.int32, x.shape, 1)
    x_gold = jnp.sum(jnp.where(col == g, x, 0.0), axis=1, keepdims=True)  # (tn,1)

    log_pt_g = x_gold - lse                            # (tn, 1)
    one_minus = 1.0 - jnp.exp(log_pt_g)                # (tn, 1)

    # (1 - pt)**gamma, specialized for common integer gammas (avoids the
    # exp(gamma*log(x)) pair on the single-slot EUP).
    if gamma == 0.0:
        mod = jnp.ones_like(one_minus)
    elif gamma == 1.0:
        mod = one_minus
    elif gamma == 2.0:
        mod = one_minus * one_minus
    elif float(gamma).is_integer() and 0.0 < gamma <= 8.0:
        mod = one_minus
        for _ in range(int(gamma) - 1):
            mod = mod * one_minus
    else:
        # NOTE: clamp at 0 before pow: fp rounding can make (1 - pt) a tiny
        # negative; the PyTorch reference would produce NaN there, we return 0.
        mod = jnp.power(jnp.maximum(one_minus, 0.0), gamma)

    valid = g != ignore_index                          # (tn, 1) bool
    contrib = jnp.where(valid, mod * log_pt_g, 0.0)    # masked focal term

    # scalar per-step accumulation into the tiny resident output blocks
    sum_ref[...] += -jnp.sum(contrib)
    cnt_ref[...] += jnp.sum(jnp.where(valid, 1.0, 0.0))


def _vmem_limit_bytes():
    """Per-generation scoped-VMEM limit; conservative fallback is v7x-safe."""
    try:
        cap = int(pltpu.get_tpu_info().vmem_capacity_bytes)
        return int(max(32 * 1024 * 1024, min(0.6 * cap, 96 * 1024 * 1024)))
    except Exception:
        return 40 * 1024 * 1024


def _pick_tile_n(N, C, pred_itemsize, vmem_limit, *, max_tile=4096):
    """Largest row tile (multiple of 8) whose double-buffered inputs fit in a
    fraction of the VMEM limit, counting the real lane-padded footprint."""
    c_pad = ((C + 127) // 128) * 128
    per_row = 2 * c_pad * pred_itemsize     # pred: 2 pipeline buffers, lane-padded
    per_row += 2 * 128 * 4                  # gold (tile_n,1) int32 pads to 128 lanes
    budget = vmem_limit // 4                # leave headroom for in-kernel temporaries
    t = budget // max(per_row, 1)
    t = min(t, max_tile)
    t = min(t, ((N + 7) // 8) * 8)          # don't over-pad tiny inputs
    t = max((t // 8) * 8, 8)
    return int(t)


def focal_loss(pred, gold, *, gamma=1.0, ignore_index=-1, tile_n=None):
    """pred: [N, C] float (f32 or bf16), gold: [N] int. Returns scalar mean focal loss."""
    N, C = pred.shape
    gold = gold.astype(jnp.int32)

    vmem_limit = _vmem_limit_bytes()
    if tile_n is None:
        tile_n = _pick_tile_n(N, C, jnp.dtype(pred.dtype).itemsize, vmem_limit)

    # pad N to a multiple of (num_splits * tile_n); padded rows -> ignore_index
    chunk = _NUM_SPLITS * tile_n
    n_pad = (-N) % chunk
    if n_pad:
        pred = jnp.concatenate([pred, jnp.zeros((n_pad, C), pred.dtype)], axis=0)
        gold = jnp.concatenate(
            [gold, jnp.full((n_pad,), ignore_index, jnp.int32)], axis=0)
    Np = pred.shape[0]
    gold2d = gold.reshape(Np, 1)
    blocks_per_split = Np // chunk

    kernel = functools.partial(
        _focal_loss_kernel, gamma=float(gamma), ignore_index=int(ignore_index))

    sums, cnts = pl.pallas_call(
        kernel,
        out_shape=(jax.ShapeDtypeStruct((_NUM_SPLITS, 1, 1), jnp.float32),
                   jax.ShapeDtypeStruct((_NUM_SPLITS, 1, 1), jnp.float32)),
        grid_spec=pltpu.PrefetchScalarGridSpec(
            num_scalar_prefetch=0,
            grid=(_NUM_SPLITS, blocks_per_split),
            in_specs=[
                pl.BlockSpec((tile_n, C),
                             lambda c, i: (c * blocks_per_split + i, 0)),
                pl.BlockSpec((tile_n, 1),
                             lambda c, i: (c * blocks_per_split + i, 0)),
            ],
            out_specs=[
                pl.BlockSpec((1, 1, 1), lambda c, i: (c, 0, 0)),
                pl.BlockSpec((1, 1, 1), lambda c, i: (c, 0, 0)),
            ],
        ),
        compiler_params=pltpu.CompilerParams(
            # split axis shards across TensorCores (v7x); row-block axis is a
            # reduction onto a resident (1,1,1) output block -> arbitrary.
            dimension_semantics=("parallel", "arbitrary"),
            vmem_limit_bytes=vmem_limit,
        ),
    )(pred, gold2d)

    # nll_loss(reduction='mean', weight=None): sum over valid / count of valid.
    # NOTE: if every row is ignored this is 0/0 = NaN, same as the reference.
    # TODO(synk): per-class `weight` (nll_loss weight=) not implemented; the
    # module default weight=None is what this kernel covers.
    loss_sum = jnp.sum(sums)
    valid_cnt = jnp.sum(cnts)
    return (loss_sum / valid_cnt).astype(pred.dtype)


def focal_loss_ref(pred, gold, *, gamma=1.0, ignore_index=-1):
    """Pure-JAX reference mirroring the PyTorch module."""
    log_pt = jax.nn.log_softmax(pred.astype(jnp.float32), axis=1)
    pt = jnp.exp(log_pt)
    log_pt = (1.0 - pt) ** gamma * log_pt
    valid = gold != ignore_index
    safe_gold = jnp.where(valid, gold, 0)
    picked = jnp.take_along_axis(log_pt, safe_gold[:, None], axis=1)[:, 0]
    return (-jnp.sum(picked * valid) / jnp.sum(valid)).astype(pred.dtype)


if __name__ == "__main__":
    key = jax.random.PRNGKey(0)
    k1, k2, k3, k4 = jax.random.split(key, 4)

    # small [N, C] logits, [N] targets (with a couple of ignored samples)
    N, C = 10, 20
    pred = jax.random.normal(k1, (N, C), dtype=jnp.float32)
    gold = jax.random.randint(k2, (N,), 0, C, dtype=jnp.int32)
    gold = gold.at[3].set(-1).at[7].set(-1)

    out = jax.block_until_ready(focal_loss(pred, gold, gamma=1.0, ignore_index=-1))
    ref = focal_loss_ref(pred, gold, gamma=1.0, ignore_index=-1)
    assert jnp.allclose(out, ref, atol=1e-5, rtol=1e-5), (out, ref)

    # exercise the specialized integer-gamma path too
    out2 = jax.block_until_ready(focal_loss(pred, gold, gamma=2.0, ignore_index=-1))
    ref2 = focal_loss_ref(pred, gold, gamma=2.0, ignore_index=-1)
    assert jnp.allclose(out2, ref2, atol=1e-5, rtol=1e-5), (out2, ref2)

    # slightly larger case forcing multiple grid steps on both splits
    N2 = 300
    pred_b = jax.random.normal(k3, (N2, C), dtype=jnp.float32)
    gold_b = jax.random.randint(k4, (N2,), 0, C, dtype=jnp.int32)
    gold_b = gold_b.at[5].set(-1).at[100].set(-1).at[299].set(-1)
    out3 = jax.block_until_ready(
        focal_loss(pred_b, gold_b, gamma=1.0, ignore_index=-1, tile_n=64))
    ref3 = focal_loss_ref(pred_b, gold_b, gamma=1.0, ignore_index=-1)
    assert jnp.allclose(out3, ref3, atol=1e-5, rtol=1e-5), (out3, ref3)

    print("KERNEL_OK")
</pallas_src>

<mosaic_0001>
module attributes {stable_mosaic.version = 11 : i64} {
  func.func @_focal_loss_kernel(%arg0: i32, %arg1: i32, %arg2: memref<16x20xf32, #tpu.memory_space<vmem>>, %arg3: memref<16x1xi32, #tpu.memory_space<vmem>>, %arg4: memref<1x1x1xf32, #tpu.memory_space<vmem>>, %arg5: memref<1x1x1xf32, #tpu.memory_space<vmem>>) attributes {dimension_semantics = [#tpu.dimension_semantics<parallel>, #tpu.dimension_semantics<arbitrary>], iteration_bounds = array<i64: 2, 1>, scalar_prefetch = 0 : i64, scratch_operands = 0 : i64, tpu.core_type = #tpu.core_type<tc>, window_params = [{transform_indices = @transform_0, window_bounds = array<i64: 16, 20>}, {transform_indices = @transform_1, window_bounds = array<i64: 16, 1>}, {transform_indices = @transform_2, window_bounds = array<i64: 1, 1, 1>}, {transform_indices = @transform_3, window_bounds = array<i64: 1, 1, 1>}]} {
    %c0_i32 = arith.constant 0 : i32
    %0 = arith.cmpi eq, %arg1, %c0_i32 : i32
    %1 = arith.extui %0 : i1 to i32
    %c0_i32_0 = arith.constant 0 : i32
    %2 = arith.cmpi ne, %1, %c0_i32_0 : i32
    scf.if %2 {
      %cst_26 = arith.constant 0.000000e+00 : f32
      %50 = vector.broadcast %cst_26 : f32 to vector<1x1x1xf32>
      %c0_27 = arith.constant 0 : index
      %c0_28 = arith.constant 0 : index
      %c0_29 = arith.constant 0 : index
      %51 = vector.load %arg4[%c0_27, %c0_28, %c0_29] : memref<1x1x1xf32, #tpu.memory_space<vmem>>, vector<1x1x1xf32>
      tpu.vector_store %arg4[%c0_27, %c0_28, %c0_29], %50 {strides = array<i32>} : memref<1x1x1xf32, #tpu.memory_space<vmem>>, vector<1x1x1xf32>,
      %cst_30 = arith.constant 0.000000e+00 : f32
      %52 = vector.broadcast %cst_30 : f32 to vector<1x1x1xf32>
      %c0_31 = arith.constant 0 : index
      %c0_32 = arith.constant 0 : index
      %c0_33 = arith.constant 0 : index
      %53 = vector.load %arg5[%c0_31, %c0_32, %c0_33] : memref<1x1x1xf32, #tpu.memory_space<vmem>>, vector<1x1x1xf32>
      tpu.vector_store %arg5[%c0_31, %c0_32, %c0_33], %52 {strides = array<i32>} : memref<1x1x1xf32, #tpu.memory_space<vmem>>, vector<1x1x1xf32>,
    } else {
    }
    %c0 = arith.constant 0 : index
    %c0_1 = arith.constant 0 : index
    %3 = vector.load %arg2[%c0, %c0_1] : memref<16x20xf32, #tpu.memory_space<vmem>>, vector<16x20xf32>
    %c0_2 = arith.constant 0 : index
    %c0_3 = arith.constant 0 : index
    %4 = vector.load %arg3[%c0_2, %c0_3] : memref<16x1xi32, #tpu.memory_space<vmem>>, vector<16x1xi32>
    %cst = arith.constant dense<0xFF800000> : vector<16xf32>
    %5 = vector.multi_reduction <maximumf>, %3, %cst [1] : vector<16x20xf32> to vector<16xf32>
    %6 = vector.shape_cast %5 : vector<16xf32> to vector<16x1xf32>
    %7 = vector.broadcast %6 : vector<16x1xf32> to vector<16x20xf32>
    %8 = arith.subf %3, %7 : vector<16x20xf32>
    %9 = math.exp %8 : vector<16x20xf32>
    %cst_4 = arith.constant dense<0.000000e+00> : vector<16xf32>
    %10 = vector.multi_reduction <add>, %9, %cst_4 [1] : vector<16x20xf32> to vector<16xf32>
    %11 = vector.shape_cast %10 : vector<16xf32> to vector<16x1xf32>
    %12 = math.log %11 : vector<16x1xf32>
    %13 = arith.addf %12, %6 : vector<16x1xf32>
    %14 = tpu.iota {dimensions = array<i32: 1>} : vector<16x20xi32>
    %15 = vector.broadcast %4 : vector<16x1xi32> to vector<16x20xi32>
    %16 = arith.cmpi eq, %14, %15 : vector<16x20xi32>
    %cst_5 = arith.constant 0.000000e+00 : f32
    %17 = vector.broadcast %cst_5 : f32 to vector<16x20xf32>
    %18 = arith.select %16, %3, %17 : vector<16x20xi1>, vector<16x20xf32>
    %cst_6 = arith.constant dense<0.000000e+00> : vector<16xf32>
    %19 = vector.multi_reduction <add>, %18, %cst_6 [1] : vector<16x20xf32> to vector<16xf32>
    %20 = vector.shape_cast %19 : vector<16xf32> to vector<16x1xf32>
    %21 = arith.subf %20, %13 : vector<16x1xf32>
    %22 = math.exp %21 : vector<16x1xf32>
    %cst_7 = arith.constant 1.000000e+00 : f32
    %23 = vector.broadcast %cst_7 : f32 to vector<16x1xf32>
    %24 = arith.subf %23, %22 : vector<16x1xf32>
    %c-1_i32 = arith.constant -1 : i32
    %25 = vector.broadcast %c-1_i32 : i32 to vector<16x1xi32>
    %26 = arith.cmpi ne, %4, %25 : vector<16x1xi32>
    %27 = arith.mulf %24, %21 : vector<16x1xf32>
    %cst_8 = arith.constant 0.000000e+00 : f32
    %28 = vector.broadcast %cst_8 : f32 to vector<16x1xf32>
    %29 = arith.select %26, %27, %28 : vector<16x1xi1>, vector<16x1xf32>
    %c0_9 = arith.constant 0 : index
    %c0_10 = arith.constant 0 : index
    %c0_11 = arith.constant 0 : index
    %30 = vector.load %arg4[%c0_9, %c0_10, %c0_11] : memref<1x1x1xf32, #tpu.memory_space<vmem>>, vector<1x1x1xf32>
    %31 = vector.shape_cast %29 : vector<16x1xf32> to vector<1x16x1xf32>
    %cst_12 = arith.constant dense<0.000000e+00> : vector<1xf32>
    %32 = vector.multi_reduction <add>, %31, %cst_12 [1, 2] : vector<1x16x1xf32> to vector<1xf32>
    %33 = vector.shape_cast %32 : vector<1xf32> to vector<1x1x1xf32>
    %34 = vector.extract %33[0, 0, 0] : f32 from vector<1x1x1xf32>
    %cst_13 = arith.constant 0.000000e+00 : f32
    %35 = arith.subf %cst_13, %34 : f32
    %36 = vector.broadcast %35 : f32 to vector<1x1x1xf32>
    %37 = arith.addf %30, %36 : vector<1x1x1xf32>
    %c0_14 = arith.constant 0 : index
    %c0_15 = arith.constant 0 : index
    %c0_16 = arith.constant 0 : index
    %38 = vector.load %arg4[%c0_14, %c0_15, %c0_16] : memref<1x1x1xf32, #tpu.memory_space<vmem>>, vector<1x1x1xf32>
    tpu.vector_store %arg4[%c0_14, %c0_15, %c0_16], %37 {strides = array<i32>} : memref<1x1x1xf32, #tpu.memory_space<vmem>>, vector<1x1x1xf32>,
    %c0_17 = arith.constant 0 : index
    %c0_18 = arith.constant 0 : index
    %c0_19 = arith.constant 0 : index
    %39 = vector.load %arg5[%c0_17, %c0_18, %c0_19] : memref<1x1x1xf32, #tpu.memory_space<vmem>>, vector<1x1x1xf32>
    %cst_20 = arith.constant 1.000000e+00 : f32
    %cst_21 = arith.constant 0.000000e+00 : f32
    %40 = vector.broadcast %cst_20 : f32 to vector<16x1xf32>
    %41 = vector.broadcast %cst_21 : f32 to vector<16x1xf32>
    %42 = arith.select %26, %40, %41 : vector<16x1xi1>, vector<16x1xf32>
    %43 = vector.shape_cast %42 : vector<16x1xf32> to vector<1x16x1xf32>
    %cst_22 = arith.constant dense<0.000000e+00> : vector<1xf32>
    %44 = vector.multi_reduction <add>, %43, %cst_22 [1, 2] : vector<1x16x1xf32> to vector<1xf32>
    %45 = vector.shape_cast %44 : vector<1xf32> to vector<1x1x1xf32>
    %46 = vector.extract %45[0, 0, 0] : f32 from vector<1x1x1xf32>
    %47 = vector.broadcast %46 : f32 to vector<1x1x1xf32>
    %48 = arith.addf %39, %47 : vector<1x1x1xf32>
    %c0_23 = arith.constant 0 : index
    %c0_24 = arith.constant 0 : index
    %c0_25 = arith.constant 0 : index
    %49 = vector.load %arg5[%c0_23, %c0_24, %c0_25] : memref<1x1x1xf32, #tpu.memory_space<vmem>>, vector<1x1x1xf32>
    tpu.vector_store %arg5[%c0_23, %c0_24, %c0_25], %48 {strides = array<i32>} : memref<1x1x1xf32, #tpu.memory_space<vmem>>, vector<1x1x1xf32>,
    return
  }
  func.func @transform_0(%arg0: i32, %arg1: i32) -> (i32, i32) {
    %c1_i32 = arith.constant 1 : i32
    %0 = arith.muli %arg0, %c1_i32 : i32
    %1 = arith.addi %0, %arg1 : i32
    %c0_i32 = arith.constant 0 : i32
    %c0_i32_0 = arith.constant 0 : i32
    return %1, %c0_i32 : i32, i32
  }
  func.func @transform_1(%arg0: i32, %arg1: i32) -> (i32, i32) {
    %c1_i32 = arith.constant 1 : i32
    %0 = arith.muli %arg0, %c1_i32 : i32
    %1 = arith.addi %0, %arg1 : i32
    %c0_i32 = arith.constant 0 : i32
    %c0_i32_0 = arith.constant 0 : i32
    return %1, %c0_i32 : i32, i32
  }
  func.func @transform_2(%arg0: i32, %arg1: i32) -> (i32, i32, i32) {
    %c0_i32 = arith.constant 0 : i32
    %c0_i32_0 = arith.constant 0 : i32
    %c0_i32_1 = arith.constant 0 : i32
    return %arg0, %c0_i32, %c0_i32_0 : i32, i32, i32
  }
  func.func @transform_3(%arg0: i32, %arg1: i32) -> (i32, i32, i32) {
    %c0_i32 = arith.constant 0 : i32
    %c0_i32_0 = arith.constant 0 : i32
    %c0_i32_1 = arith.constant 0 : i32
    return %arg0, %c0_i32, %c0_i32_0 : i32, i32, i32
  }
}

</mosaic_0001>

<llo_original>
// kernel: tpu_custom_call.1
$region0: #{tpu_custom_call.1}
  #allocation0 [shape = 'u32[]', space=smem, size = 0x4, offset = 0x4, fixed_abs, tag = 'smem constant byte address 0x4 - core index']
  #allocation1 [shape = 'u32[72,128]{1,0:T(1,128)}', space=vmem, size = 0x9000, scoped, tag = 'internal scratch']
  %s0 = inlined_call_operand.vmem [shape: f32[32,20], index: 0, kind: input, shape index: {}]
  %s1 = inlined_call_operand.vmem [shape: s32[32,1], index: 1, kind: input, shape index: {}]
  %s2 = inlined_call_operand.vmem [shape: f32[2,1,1], index: 2, kind: output, shape index: {0}]
  %s3 = inlined_call_operand.vmem [shape: f32[2,1,1], index: 3, kind: output, shape index: {1}]
  %4 = xla_tuple %s2, %s3
  %s5 = sld [smem:[#allocation0]]
  $region53: #{tpu_custom_call.1} parent=0
    _
  %s7 = ssub.s32 1, %s5
  %s8 = scalar_select 0, %s7, %s5
  loop: start=0, step=1, limit=4
  $region2: #{tpu_custom_call.1} parent=0 // loop_pre_header
    _
  $region3: #{tpu_custom_call.1} parent=0 // loop_header
    %s10 = sphi 0, %s14
    %p11 = scmp.ge.s32.totalorder %s10, 4
    %s17 = sphi 0, %s29
    %s18 = sphi 0, %s25
    %s19 = sphi 0, %s17
    %s20 = sphi 0, %s18
    %s21 = sphi 0, %s19
    %s22 = sphi 0, %s20
    %s34 = sphi 0, %s36
    %s37 = sphi 0, %s34
    %s38 = sphi 0, %s37
    %s54 = sphi 0, %s38
    %s62 = sphi 0, %s64
    %s65 = sphi 0, %s62
    %s66 = sphi 0, %s65
    %s82 = sphi 0, %s66
    %s88 = sphi 0, %s90
    %s91 = sphi 0, %s88
    %s92 = sphi 0, %s91
    %s108 = sphi 0, %s92
    %s114 = sphi 0, %s116
    %s117 = sphi 0, %s114
    %s118 = sphi 0, %s117
    %s134 = sphi 0, %s118
  $region4: #{tpu_custom_call.1} parent=0 // loop_header_branch
    %13 = sbr.rel (%p11) target = $region8
  $region5: #{tpu_custom_call.1} parent=0 // loop_body
    %s15 = ssub.s32 %s10, 1
    %s16 = ssub.s32 %s10, 2
    %s23 = sadd.s32 1, %s18
    %p24 = scmp.ge.s32.totalorder %s23, 1
    %s25 = scalar_select %p24, 0, %s23
    %s26 = sadd.s32 1, %s17
    %s27 = scalar_select %p24, %s26, %s17
    %p28 = scmp.ge.s32.totalorder %s27, 2
    %s29 = scalar_select %p28, 0, %s27
    %s30 = sadd.s32 %s17, %s18
    %s31 = sadd.s32 %s29, %s25
    %s32 = ssub.s32 %s30, %s31
    %p33 = scmp.eq.s32.totalorder %s32, 0
    %s35 = sadd.s32 %s34, 1
    %s36 = scalar_select %p33, %s34, %s35
    %p39 = pneg %p33
    %p40 = scmp.eq.s32.totalorder %s10, 1
    %p41 = por %p39, %p40
    %p42 = scmp.ne.s32.totalorder %s34, %s37
    %p43 = scmp.eq.s32.totalorder %s10, 0
    %p44 = por %p42, %p43
    %p45 = scmp.ne.s32.totalorder %s34, %s37
    %p46 = scmp.eq.s32.totalorder %s15, 1
    %p47 = por %p45, %p46
    %p48 = scmp.ne.s32.totalorder %s37, %s38
    %p49 = scmp.eq.s32.totalorder %s15, 0
    %p50 = por %p48, %p49
    %p51 = scmp.ne.s32.totalorder %s37, %s38
    %p52 = scmp.eq.s32.totalorder %s16, 1
    %p53 = por %p51, %p52
    %p55 = scmp.ne.s32.totalorder %s38, %s54
    %p56 = scmp.eq.s32.totalorder %s16, 0
    %p57 = por %p55, %p56
    %s58 = sadd.s32 %s17, %s18
    %s59 = sadd.s32 %s29, %s25
    %s60 = ssub.s32 %s58, %s59
    %p61 = scmp.eq.s32.totalorder %s60, 0
    %s63 = sadd.s32 %s62, 1
    %s64 = scalar_select %p61, %s62, %s63
    %p67 = pneg %p61
    %p68 = scmp.eq.s32.totalorder %s10, 1
    %p69 = por %p67, %p68
    %p70 = scmp.ne.s32.totalorder %s62, %s65
    %p71 = scmp.eq.s32.totalorder %s10, 0
    %p72 = por %p70, %p71
    %p73 = scmp.ne.s32.totalorder %s62, %s65
    %p74 = scmp.eq.s32.totalorder %s15, 1
    %p75 = por %p73, %p74
    %p76 = scmp.ne.s32.totalorder %s65, %s66
    %p77 = scmp.eq.s32.totalorder %s15, 0
    %p78 = por %p76, %p77
    %p79 = scmp.ne.s32.totalorder %s65, %s66
    %p80 = scmp.eq.s32.totalorder %s16, 1
    %p81 = por %p79, %p80
    %p83 = scmp.ne.s32.totalorder %s66, %s82
    %p84 = scmp.eq.s32.totalorder %s16, 0
    %p85 = por %p83, %p84
    %s86 = ssub.s32 %s17, %s29
    %p87 = scmp.eq.s32.totalorder %s86, 0
    %s89 = sadd.s32 %s88, 1
    %s90 = scalar_select %p87, %s88, %s89
    %p93 = pneg %p87
    %p94 = scmp.eq.s32.totalorder %s10, 1
    %p95 = por %p93, %p94
    %p96 = scmp.ne.s32.totalorder %s88, %s91
    %p97 = scmp.eq.s32.totalorder %s10, 0
    %p98 = por %p96, %p97
    %p99 = scmp.ne.s32.totalorder %s88, %s91
    %p100 = scmp.eq.s32.totalorder %s15, 1
    %p101 = por %p99, %p100
    %p102 = scmp.ne.s32.totalorder %s91, %s92
    %p103 = scmp.eq.s32.totalorder %s15, 0
    %p104 = por %p102, %p103
    %p105 = scmp.ne.s32.totalorder %s91, %s92
    %p106 = scmp.eq.s32.totalorder %s16, 1
    %p107 = por %p105, %p106
    %p109 = scmp.ne.s32.totalorder %s92, %s108
    %p110 = scmp.eq.s32.totalorder %s16, 0
    %p111 = por %p109, %p110
    %s112 = ssub.s32 %s17, %s29
    %p113 = scmp.eq.s32.totalorder %s112, 0
    %s115 = sadd.s32 %s114, 1
    %s116 = scalar_select %p113, %s114, %s115
    %p119 = pneg %p113
    %p120 = scmp.eq.s32.totalorder %s10, 1
    %p121 = por %p119, %p120
    %p122 = scmp.ne.s32.totalorder %s114, %s117
    %p123 = scmp.eq.s32.totalorder %s10, 0
    %p124 = por %p122, %p123
    %p125 = scmp.ne.s32.totalorder %s114, %s117
    %p126 = scmp.eq.s32.totalorder %s15, 1
    %p127 = por %p125, %p126
    %p128 = scmp.ne.s32.totalorder %s117, %s118
    %p129 = scmp.eq.s32.totalorder %s15, 0
    %p130 = por %p128, %p129
    %p131 = scmp.ne.s32.totalorder %s117, %s118
    %p132 = scmp.eq.s32.totalorder %s16, 1
    %p133 = por %p131, %p132
    %p135 = scmp.ne.s32.totalorder %s118, %s134
    %p136 = scmp.eq.s32.totalorder %s16, 0
    %p137 = por %p135, %p136
    %p138 = scmp.le.s32.totalorder 1, %s10
    %p139 = scmp.lt.s32.totalorder %s10, 3
    %p140 = pnand %p138, %p139
    %p141 = pneg %p140
    // Predicated region
    $region9: #{tpu_custom_call.1} parent=5 // pred_check
      _
    $region10: #{tpu_custom_call.1} parent=5 // pred_check_branch
      %143 = sbr.rel (%p140) target = $region12
    $region11: #{tpu_custom_call.1} parent=5 // pred_region
      %s144 = ssub.s32 %s10, 1
    $region12: #{tpu_custom_call.1} parent=5 // pred_fallthru
      _
    %p145 = scmp.lt.s32.totalorder %s10, 2
    // Predicated region
    $region13: #{tpu_custom_call.1} parent=5 // pred_check
      %p146 = pneg %p145
    $region14: #{tpu_custom_call.1} parent=5 // pred_check_branch
      %148 = sbr.rel (%p146) target = $region16
    $region15: #{tpu_custom_call.1} parent=5 // pred_region
      // Predicated region
      $region17: #{tpu_custom_call.1} parent=15 // pred_check
        %p149 = pneg %p44
      $region18: #{tpu_custom_call.1} parent=15 // pred_check_branch
        %151 = sbr.rel (%p149) target = $region20
      $region19: #{tpu_custom_call.1} parent=15 // pred_region
        %s152 = sadd.s32 %s17, %s18
        %s153 = smul.u32 2, %s152
        %p154 = scmp.lt.s32.totalorder %s153, 3
        %s155 = scalar_select %p154, %s153, 3
        %s156 = smul.addr %s155, 8
        %s157 = scalar_lea.vmem %s0, %s156
        %s158 = sadd.s32 %s17, %s18
        %s159 = smul.u32 2, %s158
      $region20: #{tpu_custom_call.1} parent=15 // pred_fallthru
        _
      // Predicated region
      $region21: #{tpu_custom_call.1} parent=15 // pred_check
        %p160 = pneg %p72
      $region22: #{tpu_custom_call.1} parent=15 // pred_check_branch
        %162 = sbr.rel (%p160) target = $region24
      $region23: #{tpu_custom_call.1} parent=15 // pred_region
        %s163 = sadd.s32 %s17, %s18
        %s164 = smul.u32 2, %s163
        %p165 = scmp.lt.s32.totalorder %s164, 3
        %s166 = scalar_select %p165, %s164, 3
        %s167 = smul.addr %s166, 8
        %s168 = scalar_lea.vmem %s1, %s167
        %s169 = sadd.s32 %s17, %s18
        %s170 = smul.u32 2, %s169
      $region24: #{tpu_custom_call.1} parent=15 // pred_fallthru
        _
    $region16: #{tpu_custom_call.1} parent=5 // pred_fallthru
      _
    %p171 = scmp.le.s32.totalorder 1, %s10
    %p172 = scmp.lt.s32.totalorder %s10, 3
    %p173 = pnand %p171, %p172
    %p174 = pneg %p173
    // Predicated region
    $region25: #{tpu_custom_call.1} parent=5 // pred_check
      _
    $region26: #{tpu_custom_call.1} parent=5 // pred_check_branch
      %176 = sbr.rel (%p173) target = $region28
    $region27: #{tpu_custom_call.1} parent=5 // pred_region
      %s177 = ssub.s32 %s10, 1
      %s178 = sadd.s32 %s19, %s20
      %s179 = smul.u32 2, %s178
      %p180 = scmp.lt.s32.totalorder %s179, 3
      %s181 = scalar_select %p180, %s179, 3
      %s182 = smul.addr %s181, 8
      %s183 = scalar_lea.vmem %s0, %s182
      %p184 = pneg %p50
      %p185 = pneg %p47
      %s186 = sadd.s32 %s19, %s20
      %s187 = smul.u32 2, %s186
      %p188 = scmp.lt.s32.totalorder %s187, 3
      %s189 = scalar_select %p188, %s187, 3
      %s190 = smul.addr %s189, 8
      %s191 = scalar_lea.vmem %s1, %s190
      %p192 = pneg %p78
      %p193 = pneg %p75
      %p194 = pneg %p104
      %p195 = pneg %p101
      %p196 = scmp.lt.s32.totalorder %s19, 1
      %s197 = scalar_select %p196, %s19, 1
      %s198 = scalar_lea.vmem %s2, %s197
      %p199 = pneg %p130
      %p200 = pneg %p127
      %p201 = scmp.lt.s32.totalorder %s19, 1
      %s202 = scalar_select %p201, %s19, 1
      %s203 = scalar_lea.vmem %s3, %s202
      %s204 = sadd.s32 %s19, %s20
      %s205 = smul.u32 2, %s204
      %p206 = scmp.lt.s32.totalorder %s205, 3
      %s207 = scalar_select %p206, %s205, 3
      %s208 = smul.addr %s207, 8
      %s209 = scalar_lea.vmem %s0, %s208
      %s210 = sadd.s32 %s19, %s20
      %s211 = smul.u32 2, %s210
      %s212 = sadd.s32 %s19, %s20
      %s213 = smul.u32 2, %s212
      %p214 = scmp.lt.s32.totalorder %s213, 3
      %s215 = scalar_select %p214, %s213, 3
      %s216 = smul.addr %s215, 8
      %s217 = scalar_lea.vmem %s1, %s216
      %s218 = sadd.s32 %s19, %s20
      %s219 = smul.u32 2, %s218
      %p220 = scmp.lt.s32.totalorder %s19, 1
      %s221 = scalar_select %p220, %s19, 1
      %s222 = scalar_lea.vmem %s2, %s221
      %p223 = scmp.lt.s32.totalorder %s19, 1
      %s224 = scalar_select %p223, %s19, 1
      %s225 = scalar_lea.vmem %s3, %s224
      %p226 = scmp.eq.s32.totalorder %s20, 0
      // Predicated region
      $region29: #{tpu_custom_call.1} parent=27 // pred_check
        %p227 = pneg %p226
      $region30: #{tpu_custom_call.1} parent=27 // pred_check_branch
        %229 = sbr.rel (%p227) target = $region32
      $region31: #{tpu_custom_call.1} parent=27 // pred_region
        %vm230 = vcmask 0
        %231 = vst.msk [vmem:[%s222] sm:$0x1] %vm230, 0.0
        %232 = vst.msk [vmem:[%s225] sm:$0x1] %vm230, 0.0
      $region32: #{tpu_custom_call.1} parent=27 // pred_fallthru
        _
      %v233 = vld [vmem:[%s209] sm:$0xff]
      %v234 = vld [vmem:[%s209 + $0x8] sm:$0xff]
      %v235 = vld [vmem:[%s217] sm:$0xff]
      %v236 = vld [vmem:[%s217 + $0x8] sm:$0xff]
      %vm237 = vcmask 162816
      %v238 = vsel %vm237, %v233, -inf
      %239 = vmax.xlane.f32.xlu0 %v238
      %v240 = vpop.xlane.xlu0 %239
      %v241 = vsel %vm237, %v234, -inf
      %242 = vmax.xlane.f32.xlu0 %v241
      %v243 = vpop.xlane.xlu0 %242
      %v244 = vsub.f32 %v233, %v240
      %v245 = vsub.f32 %v234, %v243
      %v246 = vmul.f32 %v244, 1.442695
      %v247 = vpow.pop %v246
      %v248 = vmul.f32 %v245, 1.442695
      %v249 = vpow.pop %v248
      %v250 = vsel %vm237, %v247, 0.0
      %251 = vadd.xlane.f32.xlu0 %v250
      %v252 = vpop.xlane.xlu0 %251
      %v253 = vsel %vm237, %v249, 0.0
      %254 = vadd.xlane.f32.xlu0 %v253
      %v255 = vpop.xlane.xlu0 %254
      %v256 = vlog2.pop %v252
      %v257 = vmul.f32 %v256, 0.6931472
      %v258 = vlog2.pop %v255
      %v259 = vmul.f32 %v258, 0.6931472
      %v260 = vadd.f32 %v257, %v240
      %v261 = vadd.f32 %v259, %v243
      %v262 = vlaneseq
      %v263 = vand.u32 %v262, 127
      %264 = vset.pattern.permute.xlu0 0
      %265 = vperm.xlu0 %264, %v235
      %v266 = vpop.permute.xlu0 %265
      %267 = vset.pattern.permute.xlu0 0
      %268 = vperm.xlu0 %267, %v236
      %v269 = vpop.permute.xlu0 %268
      %vm270 = vcmp.eq.s32.totalorder %v263, %v266
      %vm271 = vcmp.eq.s32.totalorder %v263, %v269
      %v272 = vsel %vm270, %v233, 0.0
      %v273 = vsel %vm271, %v234, 0.0
      %v274 = vsel %vm237, %v272, 0.0
      %275 = vadd.xlane.f32.xlu0 %v274
      %v276 = vpop.xlane.xlu0 %275
      %v277 = vsel %vm237, %v273, 0.0
      %278 = vadd.xlane.f32.xlu0 %v277
      %v279 = vpop.xlane.xlu0 %278
      %v280 = vsub.f32 %v276, %v260
      %v281 = vsub.f32 %v279, %v261
      %v282 = vmul.f32 %v280, 1.442695
      %v283 = vpow.pop %v282
      %v284 = vmul.f32 %v281, 1.442695
      %v285 = vpow.pop %v284
      %v286 = vsub.f32 1.0, %v283
      %v287 = vsub.f32 1.0, %v285
      %vm288 = vcmp.ne.s32.totalorder %v235, 4294967295
      %vm289 = vcmp.ne.s32.totalorder %v236, 4294967295
      %v290 = vmul.f32 %v286, %v280
      %v291 = vmul.f32 %v287, %v281
      %v292 = vsel %vm288, %v290, 0.0
      %v293 = vsel %vm289, %v291, 0.0
      %v294 = vld [vmem:[%s222] sm:$0x1]
      %vm295 = vcmask 7168
      %v296 = vsel %vm295, %v292, 0.0
      %v297 = vsel %vm295, %v293, 0.0
      %v298 = vadd.f32 %v296, %v297
      %299 = vadd.xlane.f32.xlu0 %v298
      %v300 = vpop.xlane.xlu0 %299
      %v301 = vrot.slane %v300, 4
      %v302 = vadd.f32 %v300, %v301
      %v303 = vrot.slane %v302, 2
      %v304 = vadd.f32 %v302, %v303
      %v305 = vrot.slane %v304, 1
      %v306 = vadd.f32 %v304, %v305
      %s307 = vtos %v306
      %s308 = ssub.f32 0.0, %s307
      %v309 = vstv %s308
      %v310 = vadd.f32 %v294, %v309
      %vm311 = vcmask 0
      %312 = vst.msk [vmem:[%s222] sm:$0x1] %vm311, %v310
      %v313 = vld [vmem:[%s225] sm:$0x1]
      %v314 = vsel %vm288, 1.0, 0.0
      %v315 = vsel %vm289, 1.0, 0.0
      %v316 = vsel %vm295, %v314, 0.0
      %v317 = vsel %vm295, %v315, 0.0
      %v318 = vadd.f32 %v316, %v317
      %319 = vadd.xlane.f32.xlu0 %v318
      %v320 = vpop.xlane.xlu0 %319
      %v321 = vrot.slane %v320, 4
      %v322 = vadd.f32 %v320, %v321
      %v323 = vrot.slane %v322, 2
      %v324 = vadd.f32 %v322, %v323
      %v325 = vrot.slane %v324, 1
      %v326 = vadd.f32 %v324, %v325
      %s327 = vtos %v326
      %v328 = vstv %s327
      %v329 = vadd.f32 %v313, %v328
      %330 = vst.msk [vmem:[%s225] sm:$0x1] %vm311, %v329
      %p331 = scmp.lt.s32.totalorder %s19, 1
      %s332 = scalar_select %p331, %s19, 1
      %s333 = scalar_lea.vmem %s2, %s332
      %p334 = scmp.lt.s32.totalorder %s19, 1
      %s335 = scalar_select %p334, %s19, 1
      %s336 = scalar_lea.vmem %s3, %s335
      // Predicated region
      $region33: #{tpu_custom_call.1} parent=27 // pred_check
        %p337 = pneg %p101
      $region34: #{tpu_custom_call.1} parent=27 // pred_check_branch
        %339 = sbr.rel (%p337) target = $region36
      $region35: #{tpu_custom_call.1} parent=27 // pred_region
        _
      $region36: #{tpu_custom_call.1} parent=27 // pred_fallthru
        _
      // Predicated region
      $region37: #{tpu_custom_call.1} parent=27 // pred_check
        %p340 = pneg %p127
      $region38: #{tpu_custom_call.1} parent=27 // pred_check_branch
        %342 = sbr.rel (%p340) target = $region40
      $region39: #{tpu_custom_call.1} parent=27 // pred_region
        _
      $region40: #{tpu_custom_call.1} parent=27 // pred_fallthru
        _
    $region28: #{tpu_custom_call.1} parent=5 // pred_fallthru
      _
    %p343 = scmp.le.s32.totalorder 2, %s10
    // Predicated region
    $region41: #{tpu_custom_call.1} parent=5 // pred_check
      %p344 = pneg %p343
    $region42: #{tpu_custom_call.1} parent=5 // pred_check_branch
      %346 = sbr.rel (%p344) target = $region44
    $region43: #{tpu_custom_call.1} parent=5 // pred_region
      %s347 = ssub.s32 %s10, 2
      // Predicated region
      $region45: #{tpu_custom_call.1} parent=43 // pred_check
        %p348 = pneg %p107
      $region46: #{tpu_custom_call.1} parent=43 // pred_check_branch
        %350 = sbr.rel (%p348) target = $region48
      $region47: #{tpu_custom_call.1} parent=43 // pred_region
        %p351 = scmp.lt.s32.totalorder %s21, 1
        %s352 = scalar_select %p351, %s21, 1
        %s353 = scalar_lea.vmem %s2, %s352
      $region48: #{tpu_custom_call.1} parent=43 // pred_fallthru
        _
      // Predicated region
      $region49: #{tpu_custom_call.1} parent=43 // pred_check
        %p354 = pneg %p133
      $region50: #{tpu_custom_call.1} parent=43 // pred_check_branch
        %356 = sbr.rel (%p354) target = $region52
      $region51: #{tpu_custom_call.1} parent=43 // pred_region
        %p357 = scmp.lt.s32.totalorder %s21, 1
        %s358 = scalar_select %p357, %s21, 1
        %s359 = scalar_lea.vmem %s3, %s358
      $region52: #{tpu_custom_call.1} parent=43 // pred_fallthru
        _
    $region44: #{tpu_custom_call.1} parent=5 // pred_fallthru
      _
  $region6: #{tpu_custom_call.1} parent=0 // loop_footer
    %s14 = sadd.s32 1, %s10
  $region7: #{tpu_custom_call.1} parent=0 // loop_footer_branch
    %9 = sbr.rel target = $region3
  $region8: #{tpu_custom_call.1} parent=0 // loop_exit
    _

</llo_original>
